<compile_context>
chip_gen: v6e
topology: v6e:2x2x1
jax: 0.10.0
libtpu: 0.0.40
codegen_flags: <defaults>
</compile_context>

<pallas_src>
import jax
import jax.numpy as jnp
from jax.experimental import pallas as pl
from jax.experimental.pallas import tpu as pltpu

BN_EPS = 1e-5
LEAKY_SLOPE = 0.01  # nn.LeakyReLU default


def bottleneck_kernel(x_ref, w_ref, b_ref, o_ref):
    """Fused Linear (BN pre-folded) + LeakyReLU. Epilogue in f32."""
    y = jnp.dot(x_ref[...], w_ref[...], preferred_element_type=jnp.float32)
    y = y + b_ref[...]                               # (tile_n, F) + (1, F)
    o_ref[...] = jnp.maximum(y, LEAKY_SLOPE * y).astype(o_ref.dtype)


def fold_bn_into_linear(w, b, gamma, beta, running_mean, running_var,
                        eps=BN_EPS, param_dtype=jnp.float32):
    """Host-side, one-time folding of eval-mode BatchNorm1d into the Linear layer.

    w: (F, K) PyTorch Linear weight; b: (F,) bias; BN params: (F,).
    Returns (w_fold (K, F), b_fold (1, F)).  b_fold stays f32 (f32 epilogue).
    """
    scale = gamma * jax.lax.rsqrt(running_var + eps)          # (F,)
    w_fold = (w * scale[:, None]).T                           # (K, F)
    b_fold = ((b - running_mean) * scale + beta).reshape(1, -1)
    return jnp.asarray(w_fold, param_dtype), jnp.asarray(b_fold, jnp.float32)


def _pick_tile_n(n, max_tile=8192):
    """Fixed 8-aligned row tile: at most `max_tile`, at most cdiv(n, 2) so the
    grid has >= 2 steps when the batch permits (v7x dual-TensorCore sharding)."""
    tile = min(max_tile, pl.cdiv(n, 2))
    tile = max(8, ((tile + 7) // 8) * 8)
    return tile


def our_netB_forward(x, w_fold, b_fold, *, max_tile_n=8192,
                     out_dtype=jnp.float32):
    N, K = x.shape
    Kw, F = w_fold.shape
    assert K == Kw, (K, Kw)

    tile_n = _pick_tile_n(N, max_tile_n)
    grid = (pl.cdiv(N, tile_n),)   # partial last block handled by Pallas masking

    out_dtype = jnp.dtype(out_dtype)
    cost = pl.CostEstimate(
        flops=2 * N * K * F,
        transcendentals=0,
        bytes_accessed=(N * K * x.dtype.itemsize
                        + K * F * w_fold.dtype.itemsize
                        + N * F * out_dtype.itemsize),
    )

    return pl.pallas_call(
        bottleneck_kernel,
        out_shape=jax.ShapeDtypeStruct((N, F), out_dtype),
        grid=grid,
        in_specs=[
            pl.BlockSpec((tile_n, K), lambda i: (i, 0)),   # x row tile
            pl.BlockSpec((K, F), lambda i: (0, 0)),        # folded weight (resident)
            pl.BlockSpec((1, F), lambda i: (0, 0)),        # folded bias (resident)
        ],
        out_specs=pl.BlockSpec((tile_n, F), lambda i: (i, 0)),
        compiler_params=pltpu.CompilerParams(
            dimension_semantics=("parallel",)),
        cost_estimate=cost,
    )(x, w_fold, b_fold)


def _reference(x, w, b, gamma, beta, running_mean, running_var):
    """Pure-JAX reference with the ORIGINAL un-folded eval-mode semantics."""
    y = x @ w.T + b
    y = (y - running_mean) * (gamma / jnp.sqrt(running_var + BN_EPS)) + beta
    return jnp.where(y > 0, y, LEAKY_SLOPE * y)


if __name__ == "__main__":
    # Shapes implied by the module: batch=8, basenet_list_output_num=32,
    # feature_dim=16.
    K, F = 32, 16

    key = jax.random.PRNGKey(0)
    kx, kw, kb, kg, kbt, km, kv, kx2 = jax.random.split(key, 8)

    # Deterministic synthetic parameters (nn.Linear / nn.BatchNorm1d shapes).
    w = jax.random.normal(kw, (F, K), dtype=jnp.float32) * 0.1   # Linear weight (F, K)
    b = jax.random.normal(kb, (F,), dtype=jnp.float32) * 0.1     # Linear bias (F,)
    gamma = 1.0 + 0.1 * jax.random.normal(kg, (F,), dtype=jnp.float32)
    beta = 0.1 * jax.random.normal(kbt, (F,), dtype=jnp.float32)
    running_mean = 0.1 * jax.random.normal(km, (F,), dtype=jnp.float32)
    running_var = 1.0 + 0.1 * jax.random.uniform(kv, (F,), dtype=jnp.float32)

    # One-time host-side folding (parameter-load time, not per call).
    w_fold_f32, b_fold = fold_bn_into_linear(
        w, b, gamma, beta, running_mean, running_var)

    # --- 1) Module's implied small batch (N=8), f32 path -------------------
    N = 8
    x = jax.random.normal(kx, (N, K), dtype=jnp.float32)
    out = jax.block_until_ready(our_netB_forward(x, w_fold_f32, b_fold))
    ref = _reference(x, w, b, gamma, beta, running_mean, running_var)
    assert jnp.allclose(out, ref, atol=1e-5, rtol=1e-5)

    # --- 2) Larger, non-tile-aligned batch: multi-block grid + masked tail --
    N2 = 1000
    x2 = jax.random.normal(kx2, (N2, K), dtype=jnp.float32)
    out2 = jax.block_until_ready(our_netB_forward(x2, w_fold_f32, b_fold))
    ref2 = _reference(x2, w, b, gamma, beta, running_mean, running_var)
    assert jnp.allclose(out2, ref2, atol=1e-5, rtol=1e-5)

    # --- 3) bf16 activations/weights (halves HBM read traffic), f32 epilogue
    w_fold_bf16 = w_fold_f32.astype(jnp.bfloat16)
    out3 = jax.block_until_ready(
        our_netB_forward(x2.astype(jnp.bfloat16), w_fold_bf16, b_fold,
                         out_dtype=jnp.float32))
    assert jnp.allclose(out3, ref2, atol=5e-2, rtol=5e-2)

    print("KERNEL_OK")
</pallas_src>

<mosaic_0001>
module attributes {stable_mosaic.version = 11 : i64} {
  func.func @bottleneck_kernel(%arg0: i32, %arg1: memref<8x32xf32, #tpu.memory_space<vmem>>, %arg2: memref<32x16xf32, #tpu.memory_space<vmem>>, %arg3: memref<1x16xf32, #tpu.memory_space<vmem>>, %arg4: memref<8x16xf32, #tpu.memory_space<vmem>>) attributes {dimension_semantics = [#tpu.dimension_semantics<parallel>], iteration_bounds = array<i64: 1>, scalar_prefetch = 0 : i64, scratch_operands = 0 : i64, tpu.core_type = #tpu.core_type<tc>, window_params = [{transform_indices = @transform_0, window_bounds = array<i64: 8, 32>}, {pipeline_mode = #tpu.pipeline_mode<synchronous>, transform_indices = @transform_1, window_bounds = array<i64: 32, 16>}, {pipeline_mode = #tpu.pipeline_mode<synchronous>, transform_indices = @transform_2, window_bounds = array<i64: 1, 16>}, {transform_indices = @transform_3, window_bounds = array<i64: 8, 16>}]} {
    %c0 = arith.constant 0 : index
    %c0_0 = arith.constant 0 : index
    %0 = vector.load %arg1[%c0, %c0_0] : memref<8x32xf32, #tpu.memory_space<vmem>>, vector<8x32xf32>
    %c0_1 = arith.constant 0 : index
    %c0_2 = arith.constant 0 : index
    %1 = vector.load %arg2[%c0_1, %c0_2] : memref<32x16xf32, #tpu.memory_space<vmem>>, vector<32x16xf32>
    %cst = arith.constant dense<0.000000e+00> : vector<8x16xf32>
    %2 = tpu.matmul %0, %1, %cst {dimension_numbers = #tpu.dot_dimension_numbers<[1], [0], [0], [1], [0, 0, 1, 1], [], []>} : vector<8x32xf32>, vector<32x16xf32>, vector<8x16xf32> -> vector<8x16xf32>
    %c0_3 = arith.constant 0 : index
    %c0_4 = arith.constant 0 : index
    %3 = vector.load %arg3[%c0_3, %c0_4] : memref<1x16xf32, #tpu.memory_space<vmem>>, vector<1x16xf32>
    %4 = vector.broadcast %3 : vector<1x16xf32> to vector<8x16xf32>
    %5 = arith.addf %2, %4 : vector<8x16xf32>
    %cst_5 = arith.constant 0.00999999977 : f32
    %6 = vector.broadcast %cst_5 : f32 to vector<8x16xf32>
    %7 = arith.mulf %6, %5 : vector<8x16xf32>
    %8 = arith.maximumf %5, %7 : vector<8x16xf32>
    %c0_6 = arith.constant 0 : index
    %c0_7 = arith.constant 0 : index
    %9 = vector.load %arg4[%c0_6, %c0_7] : memref<8x16xf32, #tpu.memory_space<vmem>>, vector<8x16xf32>
    tpu.vector_store %arg4[%c0_6, %c0_7], %8 {strides = array<i32>} : memref<8x16xf32, #tpu.memory_space<vmem>>, vector<8x16xf32>,
    return
  }
  func.func @transform_0(%arg0: i32) -> (i32, i32) {
    %c0_i32 = arith.constant 0 : i32
    %c0_i32_0 = arith.constant 0 : i32
    return %arg0, %c0_i32 : i32, i32
  }
  func.func @transform_1(%arg0: i32) -> (i32, i32) {
    %c0_i32 = arith.constant 0 : i32
    %c0_i32_0 = arith.constant 0 : i32
    %c0_i32_1 = arith.constant 0 : i32
    return %c0_i32, %c0_i32_0 : i32, i32
  }
  func.func @transform_2(%arg0: i32) -> (i32, i32) {
    %c0_i32 = arith.constant 0 : i32
    %c0_i32_0 = arith.constant 0 : i32
    %c0_i32_1 = arith.constant 0 : i32
    return %c0_i32, %c0_i32_0 : i32, i32
  }
  func.func @transform_3(%arg0: i32) -> (i32, i32) {
    %c0_i32 = arith.constant 0 : i32
    %c0_i32_0 = arith.constant 0 : i32
    return %arg0, %c0_i32 : i32, i32
  }
}

</mosaic_0001>

<llo_original>
// kernel: tpu_custom_call.1
$region0: #{tpu_custom_call.1}
  #allocation0 [shape = 'u32[]', space=smem, size = 0x4, offset = 0x4, fixed_abs, tag = 'smem constant byte address 0x4 - core index']
  #allocation1 [shape = 'u32[144,128]{1,0:T(1,128)}', space=vmem, size = 0x12000, scoped, tag = 'internal scratch']
  %s0 = inlined_call_operand.vmem [shape: f32[8,32], index: 0, kind: input, shape index: {}]
  %s1 = inlined_call_operand.vmem [shape: f32[32,16], index: 1, kind: input, shape index: {}]
  %s2 = inlined_call_operand.vmem [shape: f32[1,16], index: 2, kind: input, shape index: {}]
  %s3 = inlined_call_operand.hbm [shape: f32[8,16], index: 3, kind: output, shape index: {}]
  %s4 = sld [smem:[#allocation0]]
  $region22: #{tpu_custom_call.1} parent=0
    _
  %s6 = ssub.s32 1, %s4
  %s7 = scalar_select 0, %s6, %s4
  $region1: #{tpu_custom_call.1} parent=0
    #allocation2 [shape = 'u8[4096]{0}', space=vmem, size = 0x1000, scoped, tag = 'output window, operand 0, single buffered']
    #allocation3 [shape = 's32[1]{0}', space=sflag, size = 0x4, scoped, tag = 'scoped memory for tpu_custom_call.1']
    %8 = vsyncpa [#allocation3], 0
    // Predicated region
    $region2: #{tpu_custom_call.1} parent=1 // pred_check
      _
    $region3: #{tpu_custom_call.1} parent=1 // pred_check_branch
      %10 = sbr.rel (0) target = $region5
    $region4: #{tpu_custom_call.1} parent=1 // pred_region
      _
    $region5: #{tpu_custom_call.1} parent=1 // pred_fallthru
      _
    // Predicated region
    $region6: #{tpu_custom_call.1} parent=1 // pred_check
      _
    $region7: #{tpu_custom_call.1} parent=1 // pred_check_branch
      %12 = sbr.rel (0) target = $region9
    $region8: #{tpu_custom_call.1} parent=1 // pred_region
      _
    $region9: #{tpu_custom_call.1} parent=1 // pred_fallthru
      _
    // Predicated region
    $region10: #{tpu_custom_call.1} parent=1 // pred_check
      _
    $region11: #{tpu_custom_call.1} parent=1 // pred_check_branch
      %14 = sbr.rel (0) target = $region13
    $region12: #{tpu_custom_call.1} parent=1 // pred_region
      _
    $region13: #{tpu_custom_call.1} parent=1 // pred_fallthru
      _
    %v15 = vld [vmem:[%s0] sm:$0xff]
    %v16 = vld [vmem:[%s1] sm:$0xff]
    %v17 = vld [vmem:[%s1 + $0x8] sm:$0xff]
    %v18 = vld [vmem:[%s1 + $0x10] sm:$0xff]
    %v19 = vld [vmem:[%s1 + $0x18] sm:$0xff]
    %v20 = vld [vmem:[%s2] sm:$0x1]
    %v22 = vlaneseq
    %v23 = vshrl.u32 %v22, 7
    %v24 = vsub.s32 0, %v23
    %v25 = vrot.slane %v20, %v24
    %vm27 = vcmask 261120
    %v29 = vsel %vm27, %v15, 0
    %31 = vmatprep.subr.mxu0 0.0
    %32 = vmatpush1.msra.mxu0 0.0
    %33 = vmatprep.subr.mxu0 0.0
    %34 = vmatpush1.msra.mxu0 0.0
    %35 = vmatprep.subr.mxu0 0.0
    %36 = vmatpush1.msra.mxu0 0.0
    %37 = vmatprep.subr.mxu0 0.0
    %38 = vmatpush1.msra.mxu0 0.0
    %39 = vmatprep.subr.mxu0 0.0
    %40 = vmatpush1.msra.mxu0 0.0
    %41 = vmatprep.subr.mxu0 0.0
    %42 = vmatpush1.msra.mxu0 0.0
    %43 = vmatprep.subr.mxu0 0.0
    %44 = vmatpush1.msra.mxu0 0.0
    %45 = vmatprep.subr.mxu0 0.0
    %46 = vmatpush1.msra.mxu0 0.0
    %47 = vmatprep.subr.mxu0 0.0
    %48 = vmatpush1.msra.mxu0 0.0
    %49 = vmatprep.subr.mxu0 0.0
    %50 = vmatpush1.msra.mxu0 0.0
    %51 = vmatprep.subr.mxu0 0.0
    %52 = vmatpush1.msra.mxu0 0.0
    %53 = vmatprep.subr.mxu0 0.0
    %54 = vmatpush1.msra.mxu0 0.0
    %55 = vmatprep.subr.mxu0 0.0
    %56 = vmatpush1.msra.mxu0 %v19
    %57 = vmatprep.subr.mxu0 0.0
    %58 = vmatpush1.msra.mxu0 %v18
    %59 = vmatprep.subr.mxu0 0.0
    %60 = vmatpush1.msra.mxu0 %v17
    %61 = vmatprep.subr.mxu0 0.0
    %62 = vmatpush1.msra.mxu0 %v16
    %63 = vmatprep.subr.mxu0 0.0
    %64 = vmatpush2.msra.mxu0 0.0
    %65 = vmatprep.subr.mxu0 0.0
    %66 = vmatpush2.msra.mxu0 0.0
    %67 = vmatprep.subr.mxu0 0.0
    %68 = vmatpush2.msra.mxu0 0.0
    %69 = vmatprep.subr.mxu0 0.0
    %70 = vmatpush2.msra.mxu0 0.0
    %71 = vmatprep.subr.mxu0 0.0
    %72 = vmatpush2.msra.mxu0 0.0
    %73 = vmatprep.subr.mxu0 0.0
    %74 = vmatpush2.msra.mxu0 0.0
    %75 = vmatprep.subr.mxu0 0.0
    %76 = vmatpush2.msra.mxu0 0.0
    %77 = vmatprep.subr.mxu0 0.0
    %78 = vmatpush2.msra.mxu0 0.0
    %79 = vmatprep.subr.mxu0 0.0
    %80 = vmatpush2.msra.mxu0 0.0
    %81 = vmatprep.subr.mxu0 0.0
    %82 = vmatpush2.msra.mxu0 0.0
    %83 = vmatprep.subr.mxu0 0.0
    %84 = vmatpush2.msra.mxu0 0.0
    %85 = vmatprep.subr.mxu0 0.0
    %86 = vmatpush2.msra.mxu0 0.0
    %87 = vmatprep.subr.mxu0 0.0
    %88 = vmatpush2.msra.mxu0 0.0
    %89 = vmatprep.subr.mxu0 0.0
    %90 = vmatpush2.msra.mxu0 0.0
    %91 = vmatprep.subr.mxu0 0.0
    %92 = vmatpush2.msra.mxu0 0.0
    %93 = vmatprep.subr.mxu0 0.0
    %94 = vmatpush2.msra.mxu0 0.0
    %95 = vmatprep.mubr.f32.mxu0 0.0
    %96 = vmatmul.mubr.f32.gmra.mxu0 %v29
    %v97 = vpop.f32.mrf.mxu0
    %v98 = vadd.f32 %v25, %v97
    %v99 = vpop.f32.mrf.mxu0
    %100 = vdwg.mxu0
    %v101 = vmul.f32 %v98, 0.01
    %v102 = vmax.f32 %v98, %v101
    %vm103 = vcmask 130048
    %104 = vst.msk [vmem:[#allocation2] sm:$0xff] %vm103, %v102
    // Predicated region
    $region14: #{tpu_custom_call.1} parent=1 // pred_check
      _
    $region15: #{tpu_custom_call.1} parent=1 // pred_check_branch
      %106 = sbr.rel (0) target = $region17
    $region16: #{tpu_custom_call.1} parent=1 // pred_region
      %s108 = ssub.s32 128, 128
      %109 = vsyncadd [#allocation3], %s108
      %s111 = sshll.u32 [#allocation2], 4
      %s112 = int_to_ptr.vmem [resolvable:$true] %s111
      %114 = dma.vmem_to_hbm [thread:$0]  %s112, 128, %s3, [#allocation3]
    $region17: #{tpu_custom_call.1} parent=1 // pred_fallthru
      _
    // Predicated region
    $region18: #{tpu_custom_call.1} parent=1 // pred_check
      _
    $region19: #{tpu_custom_call.1} parent=1 // pred_check_branch
      %116 = sbr.rel (0) target = $region21
    $region20: #{tpu_custom_call.1} parent=1 // pred_region
      %117 = dma.done [#allocation3], 128
    $region21: #{tpu_custom_call.1} parent=1 // pred_fallthru
      _
    %118 = vsyncpa [#allocation3], 1

</llo_original>
